<compile_context>
chip_gen: v7x
topology: tpu7x:2x2x1
jax: 0.10.0
libtpu: 0.0.40
codegen_flags: <defaults>
</compile_context>

<pallas_src>
import math
import jax
import jax.numpy as jnp
from jax.experimental import pallas as pl
from jax.experimental.pallas import tpu as pltpu

LANE = 128  # TPU vreg lane width


def compute_packing(layers):
    """Return (wmax_eff, pack, width): per-row logical width, rows-per-vreg-row,
    and the packed lane width (pack * wmax_eff, a multiple of / equal to 128)."""
    wmax = max(layers)
    if wmax <= LANE:
        wmax_eff = pl.next_power_of_2(wmax)   # power of 2 -> divides 128
        pack = LANE // wmax_eff
    else:
        wmax_eff = pl.cdiv(wmax, LANE) * LANE
        pack = 1
    return wmax_eff, pack, pack * wmax_eff


def make_net_kernel(n_hid):
    """Kernel body: residual sin-MLP on one packed batch tile.

    Refs:
      x_ref : (TILE_ROWS, width)      packed activation tile (zero-padded lanes)
      w_ref : (L, width, width)       block-diagonal packed weights (resident)
      b_ref : (L, 1, width)           lane-tiled packed biases     (resident)
      o_ref : (TILE_ROWS, width)      packed output tile
    """

    def kernel(x_ref, w_ref, b_ref, o_ref):
        x = x_ref[...]
        for i in range(n_hid):
            l1, l2 = 2 * i, 2 * i + 1
            h = jnp.sin(
                jnp.dot(x, w_ref[l1], preferred_element_type=jnp.float32)
                + b_ref[l1]
            )
            h = jnp.sin(
                jnp.dot(h, w_ref[l2], preferred_element_type=jnp.float32)
                + b_ref[l2]
            )
            # Residual skip: padded lanes of both h and x are exactly zero,
            # so this equals h + concat(x, zeros) of the original module.
            x = h + x
        last = 2 * n_hid
        o_ref[...] = (
            jnp.dot(x, w_ref[last], preferred_element_type=jnp.float32)
            + b_ref[last]
        )

    return kernel


def init_params(key, layers):
    """PyTorch-style Linear init: U(-1/sqrt(fan_in), 1/sqrt(fan_in)).

    Flat list [w, b, w, b, ...] matching the fc Sequential ordering.  Weights
    are stored (in_features, out_features) so each layer is `x @ W + b`.
    """
    n_hid = len(layers) - 2
    shapes = []
    for i in range(n_hid):
        shapes.append((layers[i], layers[i + 1]))      # fc[2i]
        shapes.append((layers[i + 1], layers[i + 1]))  # fc[2i+1]
    shapes.append((layers[-2], layers[-1]))            # fc[-1]

    params = []
    for (fan_in, fan_out) in shapes:
        key, kw, kb = jax.random.split(key, 3)
        bound = 1.0 / math.sqrt(fan_in)
        w = jax.random.uniform(kw, (fan_in, fan_out), jnp.float32, -bound, bound)
        b = jax.random.uniform(kb, (1, fan_out), jnp.float32, -bound, bound)
        params.append(w)
        params.append(b)
    return params


def pack_params(params, layers):
    """Zero-pad each (W, b) to (Wmax, Wmax)/(1, Wmax), replicate block-diagonally
    `pack` times to 128 lanes, and stack across layers.

    Zero padding is exact: zero weight rows kill padded input lanes, zero
    weight cols + zero biases give sin(0)=0 in padded output lanes, so the
    skip connection never needs a concat.  Block-diagonal replication keeps
    the `pack` batch rows sharing one vreg row fully independent.
    """
    n_hid = len(layers) - 2
    for i in range(n_hid):
        # Required for the zero-padded-lane residual (same assumption the
        # PyTorch concat makes).
        assert layers[i + 1] >= layers[i], "hidden widths must be non-decreasing"
    assert layers[-1] <= max(layers[:-1]) or True  # output always fits wmax=max(layers)

    n_layers = 2 * n_hid + 1
    wmax_eff, pack, width = compute_packing(layers)
    eye = jnp.eye(pack, dtype=jnp.float32)

    w_blocks, b_blocks = [], []
    for l in range(n_layers):
        w = params[2 * l]
        b = params[2 * l + 1].reshape(1, -1)
        fan_in, fan_out = w.shape
        w_pad = jnp.zeros((wmax_eff, wmax_eff), jnp.float32).at[:fan_in, :fan_out].set(w)
        b_pad = jnp.zeros((1, wmax_eff), jnp.float32).at[:, :fan_out].set(b)
        w_blocks.append(jnp.kron(eye, w_pad))         # (width, width) block-diag
        b_blocks.append(jnp.tile(b_pad, (1, pack)))   # (1, width)
    return jnp.stack(w_blocks), jnp.stack(b_blocks)


def net_forward(x, w_all, b_all, layers, *, max_tile_rows=1024):
    """Residual-sin-MLP forward, lane-packed and tiled over the batch axis."""
    B, in_dim = x.shape
    L, width, _ = w_all.shape
    wmax_eff, pack, width_chk = compute_packing(layers)
    assert width_chk == width, "w_all was packed for a different layer config"
    out_dim = layers[-1]
    n_hid = len(layers) - 2

    # Lane-pad the input to the per-row logical width (padded lanes are zero,
    # establishing the padded-lane invariant used by the in-kernel residual).
    if in_dim < wmax_eff:
        x = jnp.pad(x, ((0, 0), (0, wmax_eff - in_dim)))

    # Pack `pack` batch rows per 128-lane row (pad the batch so it reshapes).
    b_pad = pl.cdiv(B, pack) * pack
    if b_pad != B:
        x = jnp.pad(x, ((0, b_pad - B), (0, 0)))
    rows = b_pad // pack
    xp = x.reshape(rows, width)

    # Batch tile (in packed rows):
    #   * tiny problems: single full-extent block (no (8,128) constraint issue),
    #   * otherwise: at least 2 grid steps so both v7x TensorCores get work,
    #     each a multiple of 8 sublanes, capped to amortize step overhead
    #     without blowing VMEM.
    if rows <= 16:
        tile_rows = rows
    else:
        half = pl.cdiv(rows, 2)
        half = pl.cdiv(half, 8) * 8
        tile_rows = min(max_tile_rows, half)
    grid = (pl.cdiv(rows, tile_rows),)

    # Advisory cost estimate for the XLA scheduler (padded-width over-count is
    # harmless).
    flops = 2 * rows * L * width * width
    transcendentals = 2 * n_hid * rows * width
    bytes_accessed = 4 * (2 * rows * width + L * width * width + L * width)

    # Double-buffered activation tiles (in + out) + double-buffered resident
    # params; raise the scoped VMEM limit only if we'd exceed the default.
    vmem_est = 4 * (2 * 2 * tile_rows * width + 2 * L * (width * width + width))
    cp_kwargs = dict(dimension_semantics=("parallel",))
    if vmem_est > (30 << 20):
        cp_kwargs["vmem_limit_bytes"] = min(vmem_est + (8 << 20), 64 << 20)

    out = pl.pallas_call(
        make_net_kernel(n_hid),
        out_shape=jax.ShapeDtypeStruct((rows, width), jnp.float32),
        grid=grid,
        in_specs=[
            pl.BlockSpec((tile_rows, width), lambda i: (i, 0)),    # activations
            pl.BlockSpec((L, width, width), lambda i: (0, 0, 0)),  # weights (resident)
            pl.BlockSpec((L, 1, width), lambda i: (0, 0, 0)),      # biases  (resident)
        ],
        out_specs=pl.BlockSpec((tile_rows, width), lambda i: (i, 0)),
        compiler_params=pltpu.CompilerParams(**cp_kwargs),
        cost_estimate=pl.CostEstimate(
            flops=int(flops),
            transcendentals=int(transcendentals),
            bytes_accessed=int(bytes_accessed),
        ),
    )(xp, w_all, b_all)

    # Unpack: (rows, pack*wmax_eff) -> (b_pad, wmax_eff) -> true (B, out_dim).
    return out.reshape(b_pad, wmax_eff)[:B, :out_dim]


def net_forward_ref(x, params, layers):
    """Pure-JAX reference (mirrors the PyTorch module) for correctness."""
    n_hid = len(layers) - 2
    p = 0
    for i in range(n_hid):
        w1, b1, w2, b2 = params[p], params[p + 1], params[p + 2], params[p + 3]
        p += 4
        h = jnp.sin(x @ w1 + b1)
        h = jnp.sin(h @ w2 + b2)
        diff = layers[i + 1] - layers[i]
        pad = jnp.zeros((x.shape[0], diff), jnp.float32)
        x = h + jnp.concatenate([x, pad], axis=1)
    return x @ params[p] + params[p + 1]


if __name__ == "__main__":
    # Small shapes consistent with the module: Net(layers=[8, 32, 32, 4])
    layers = [8, 32, 32, 4]

    params = init_params(jax.random.PRNGKey(0), layers)
    w_all, b_all = pack_params(params, layers)

    key = jax.random.PRNGKey(0)

    # Case 1: small batch (single grid step, full-extent block).
    batch = 16
    key, kx = jax.random.split(key)
    x = jax.random.uniform(kx, (batch, layers[0]), jnp.float32)
    out = jax.block_until_ready(net_forward(x, w_all, b_all, layers))
    ref = net_forward_ref(x, params, layers)
    assert out.shape == (batch, layers[-1])
    assert jnp.allclose(out, ref, atol=1e-5, rtol=1e-5), "mismatch vs reference (B=16)"

    # Case 2: batch not a multiple of the pack factor and large enough to use
    # >=2 grid steps with a ragged final block (exercises batch padding,
    # multi-step pipelining, and masked last-block writes).
    batch2 = 198
    key, kx2 = jax.random.split(key)
    x2 = jax.random.uniform(kx2, (batch2, layers[0]), jnp.float32)
    out2 = jax.block_until_ready(net_forward(x2, w_all, b_all, layers))
    ref2 = net_forward_ref(x2, params, layers)
    assert out2.shape == (batch2, layers[-1])
    assert jnp.allclose(out2, ref2, atol=1e-5, rtol=1e-5), "mismatch vs reference (B=198)"

    print("KERNEL_OK")
</pallas_src>

<mosaic_0001>
module attributes {stable_mosaic.version = 11 : i64} {
  func.func @kernel(%arg0: i32, %arg1: memref<4x128xf32, #tpu.memory_space<vmem>>, %arg2: memref<5x128x128xf32, #tpu.memory_space<vmem>>, %arg3: memref<5x1x128xf32, #tpu.memory_space<vmem>>, %arg4: memref<4x128xf32, #tpu.memory_space<vmem>>) attributes {dimension_semantics = [#tpu.dimension_semantics<parallel>], iteration_bounds = array<i64: 1>, scalar_prefetch = 0 : i64, scratch_operands = 0 : i64, tpu.core_type = #tpu.core_type<tc>, window_params = [{transform_indices = @transform_0, window_bounds = array<i64: 4, 128>}, {pipeline_mode = #tpu.pipeline_mode<synchronous>, transform_indices = @transform_1, window_bounds = array<i64: 5, 128, 128>}, {pipeline_mode = #tpu.pipeline_mode<synchronous>, transform_indices = @transform_2, window_bounds = array<i64: 5, 1, 128>}, {transform_indices = @transform_3, window_bounds = array<i64: 4, 128>}]} {
    %c0 = arith.constant 0 : index
    %c0_0 = arith.constant 0 : index
    %0 = vector.load %arg1[%c0, %c0_0] : memref<4x128xf32, #tpu.memory_space<vmem>>, vector<4x128xf32>
    %c0_1 = arith.constant 0 : index
    %c0_2 = arith.constant 0 : index
    %c0_3 = arith.constant 0 : index
    %1 = vector.load %arg2[%c0_1, %c0_2, %c0_3] : memref<5x128x128xf32, #tpu.memory_space<vmem>>, vector<1x128x128xf32>
    %2 = vector.shape_cast %1 : vector<1x128x128xf32> to vector<128x128xf32>
    %cst = arith.constant dense<0.000000e+00> : vector<4x128xf32>
    %3 = tpu.matmul %0, %2, %cst {dimension_numbers = #tpu.dot_dimension_numbers<[1], [0], [0], [1], [0, 0, 1, 1], [], []>} : vector<4x128xf32>, vector<128x128xf32>, vector<4x128xf32> -> vector<4x128xf32>
    %c0_4 = arith.constant 0 : index
    %c0_5 = arith.constant 0 : index
    %c0_6 = arith.constant 0 : index
    %4 = vector.load %arg3[%c0_4, %c0_5, %c0_6] : memref<5x1x128xf32, #tpu.memory_space<vmem>>, vector<1x1x128xf32>
    %5 = vector.shape_cast %4 : vector<1x1x128xf32> to vector<1x128xf32>
    %6 = vector.broadcast %5 : vector<1x128xf32> to vector<4x128xf32>
    %7 = arith.addf %3, %6 : vector<4x128xf32>
    %8 = math.sin %7 : vector<4x128xf32>
    %c1 = arith.constant 1 : index
    %c0_7 = arith.constant 0 : index
    %c0_8 = arith.constant 0 : index
    %9 = vector.load %arg2[%c1, %c0_7, %c0_8] : memref<5x128x128xf32, #tpu.memory_space<vmem>>, vector<1x128x128xf32>
    %10 = vector.shape_cast %9 : vector<1x128x128xf32> to vector<128x128xf32>
    %cst_9 = arith.constant dense<0.000000e+00> : vector<4x128xf32>
    %11 = tpu.matmul %8, %10, %cst_9 {dimension_numbers = #tpu.dot_dimension_numbers<[1], [0], [0], [1], [0, 0, 1, 1], [], []>} : vector<4x128xf32>, vector<128x128xf32>, vector<4x128xf32> -> vector<4x128xf32>
    %c1_10 = arith.constant 1 : index
    %c0_11 = arith.constant 0 : index
    %c0_12 = arith.constant 0 : index
    %12 = vector.load %arg3[%c1_10, %c0_11, %c0_12] : memref<5x1x128xf32, #tpu.memory_space<vmem>>, vector<1x1x128xf32>
    %13 = vector.shape_cast %12 : vector<1x1x128xf32> to vector<1x128xf32>
    %14 = vector.broadcast %13 : vector<1x128xf32> to vector<4x128xf32>
    %15 = arith.addf %11, %14 : vector<4x128xf32>
    %16 = math.sin %15 : vector<4x128xf32>
    %17 = arith.addf %16, %0 : vector<4x128xf32>
    %c2 = arith.constant 2 : index
    %c0_13 = arith.constant 0 : index
    %c0_14 = arith.constant 0 : index
    %18 = vector.load %arg2[%c2, %c0_13, %c0_14] : memref<5x128x128xf32, #tpu.memory_space<vmem>>, vector<1x128x128xf32>
    %19 = vector.shape_cast %18 : vector<1x128x128xf32> to vector<128x128xf32>
    %cst_15 = arith.constant dense<0.000000e+00> : vector<4x128xf32>
    %20 = tpu.matmul %17, %19, %cst_15 {dimension_numbers = #tpu.dot_dimension_numbers<[1], [0], [0], [1], [0, 0, 1, 1], [], []>} : vector<4x128xf32>, vector<128x128xf32>, vector<4x128xf32> -> vector<4x128xf32>
    %c2_16 = arith.constant 2 : index
    %c0_17 = arith.constant 0 : index
    %c0_18 = arith.constant 0 : index
    %21 = vector.load %arg3[%c2_16, %c0_17, %c0_18] : memref<5x1x128xf32, #tpu.memory_space<vmem>>, vector<1x1x128xf32>
    %22 = vector.shape_cast %21 : vector<1x1x128xf32> to vector<1x128xf32>
    %23 = vector.broadcast %22 : vector<1x128xf32> to vector<4x128xf32>
    %24 = arith.addf %20, %23 : vector<4x128xf32>
    %25 = math.sin %24 : vector<4x128xf32>
    %c3 = arith.constant 3 : index
    %c0_19 = arith.constant 0 : index
    %c0_20 = arith.constant 0 : index
    %26 = vector.load %arg2[%c3, %c0_19, %c0_20] : memref<5x128x128xf32, #tpu.memory_space<vmem>>, vector<1x128x128xf32>
    %27 = vector.shape_cast %26 : vector<1x128x128xf32> to vector<128x128xf32>
    %cst_21 = arith.constant dense<0.000000e+00> : vector<4x128xf32>
    %28 = tpu.matmul %25, %27, %cst_21 {dimension_numbers = #tpu.dot_dimension_numbers<[1], [0], [0], [1], [0, 0, 1, 1], [], []>} : vector<4x128xf32>, vector<128x128xf32>, vector<4x128xf32> -> vector<4x128xf32>
    %c3_22 = arith.constant 3 : index
    %c0_23 = arith.constant 0 : index
    %c0_24 = arith.constant 0 : index
    %29 = vector.load %arg3[%c3_22, %c0_23, %c0_24] : memref<5x1x128xf32, #tpu.memory_space<vmem>>, vector<1x1x128xf32>
    %30 = vector.shape_cast %29 : vector<1x1x128xf32> to vector<1x128xf32>
    %31 = vector.broadcast %30 : vector<1x128xf32> to vector<4x128xf32>
    %32 = arith.addf %28, %31 : vector<4x128xf32>
    %33 = math.sin %32 : vector<4x128xf32>
    %34 = arith.addf %33, %17 : vector<4x128xf32>
    %c4 = arith.constant 4 : index
    %c0_25 = arith.constant 0 : index
    %c0_26 = arith.constant 0 : index
    %35 = vector.load %arg2[%c4, %c0_25, %c0_26] : memref<5x128x128xf32, #tpu.memory_space<vmem>>, vector<1x128x128xf32>
    %36 = vector.shape_cast %35 : vector<1x128x128xf32> to vector<128x128xf32>
    %cst_27 = arith.constant dense<0.000000e+00> : vector<4x128xf32>
    %37 = tpu.matmul %34, %36, %cst_27 {dimension_numbers = #tpu.dot_dimension_numbers<[1], [0], [0], [1], [0, 0, 1, 1], [], []>} : vector<4x128xf32>, vector<128x128xf32>, vector<4x128xf32> -> vector<4x128xf32>
    %c4_28 = arith.constant 4 : index
    %c0_29 = arith.constant 0 : index
    %c0_30 = arith.constant 0 : index
    %38 = vector.load %arg3[%c4_28, %c0_29, %c0_30] : memref<5x1x128xf32, #tpu.memory_space<vmem>>, vector<1x1x128xf32>
    %39 = vector.shape_cast %38 : vector<1x1x128xf32> to vector<1x128xf32>
    %40 = vector.broadcast %39 : vector<1x128xf32> to vector<4x128xf32>
    %41 = arith.addf %37, %40 : vector<4x128xf32>
    %c0_31 = arith.constant 0 : index
    %c0_32 = arith.constant 0 : index
    %42 = vector.load %arg4[%c0_31, %c0_32] : memref<4x128xf32, #tpu.memory_space<vmem>>, vector<4x128xf32>
    tpu.vector_store %arg4[%c0_31, %c0_32], %41 {strides = array<i32>} : memref<4x128xf32, #tpu.memory_space<vmem>>, vector<4x128xf32>,
    return
  }
  func.func @transform_0(%arg0: i32) -> (i32, i32) {
    %c0_i32 = arith.constant 0 : i32
    %c0_i32_0 = arith.constant 0 : i32
    return %arg0, %c0_i32 : i32, i32
  }
  func.func @transform_1(%arg0: i32) -> (i32, i32, i32) {
    %c0_i32 = arith.constant 0 : i32
    %c0_i32_0 = arith.constant 0 : i32
    %c0_i32_1 = arith.constant 0 : i32
    %c0_i32_2 = arith.constant 0 : i32
    return %c0_i32, %c0_i32_0, %c0_i32_1 : i32, i32, i32
  }
  func.func @transform_2(%arg0: i32) -> (i32, i32, i32) {
    %c0_i32 = arith.constant 0 : i32
    %c0_i32_0 = arith.constant 0 : i32
    %c0_i32_1 = arith.constant 0 : i32
    %c0_i32_2 = arith.constant 0 : i32
    return %c0_i32, %c0_i32_0, %c0_i32_1 : i32, i32, i32
  }
  func.func @transform_3(%arg0: i32) -> (i32, i32) {
    %c0_i32 = arith.constant 0 : i32
    %c0_i32_0 = arith.constant 0 : i32
    return %arg0, %c0_i32 : i32, i32
  }
}

</mosaic_0001>

<llo_original>
// kernel: tpu_custom_call.1
$region0: #{tpu_custom_call.1}
  #allocation0 [shape = 'u32[]', space=smem, size = 0x4, offset = 0x4, fixed_abs, tag = 'smem constant byte address 0x4 - core index']
  #allocation1 [shape = 'u32[144,128]{1,0:T(1,128)}', space=vmem, size = 0x12000, scoped, tag = 'internal scratch']
  %s0 = inlined_call_operand.hbm [shape: f32[4,128], index: 0, kind: input, shape index: {}]
  %s1 = inlined_call_operand.hbm [shape: f32[5,128,128], index: 1, kind: input, shape index: {}]
  %s2 = inlined_call_operand.vmem [shape: f32[5,1,128], index: 2, kind: input, shape index: {}]
  %s3 = inlined_call_operand.hbm [shape: f32[4,128], index: 3, kind: output, shape index: {}]
  %s4 = sld [smem:[#allocation0]]
  $region30: #{tpu_custom_call.1} parent=0
    _
  %s6 = ssub.s32 1, %s4
  %s7 = scalar_select 0, %s6, %s4
  $region1: #{tpu_custom_call.1} parent=0
    #allocation2 [shape = 'u8[2048]{0}', space=vmem, size = 0x800, scoped, tag = 'input window, operand 0, single buffered']
    #allocation3 [shape = 's32[1]{0}', space=sflag, size = 0x4, scoped, tag = 'scoped memory for tpu_custom_call.1']
    #allocation4 [shape = 's32[1]{0}', space=sflag, size = 0x4, scoped, tag = 'scoped memory for tpu_custom_call.1']
    #allocation5 [shape = 'u8[327680]{0}', space=vmem, size = 0x50000, scoped, tag = 'input window, operand 1, single buffered']
    #allocation6 [shape = 's32[1]{0}', space=sflag, size = 0x4, scoped, tag = 'scoped memory for tpu_custom_call.1']
    #allocation7 [shape = 'u8[2048]{0}', space=vmem, size = 0x800, scoped, tag = 'output window, operand 0, single buffered']
    %8 = vsyncpa [#allocation3], 0
    %9 = vsyncpa [#allocation6], 0
    %10 = vsyncpa [#allocation4], 0
    // Predicated region
    $region2: #{tpu_custom_call.1} parent=1 // pred_check
      _
    $region3: #{tpu_custom_call.1} parent=1 // pred_check_branch
      %12 = sbr.rel (0) target = $region5
    $region4: #{tpu_custom_call.1} parent=1 // pred_region
      %s14 = ssub.s32 64, 64
      %15 = vsyncadd [#allocation3], %s14
      %s17 = sshll.u32 [#allocation2], 4
      %s18 = int_to_ptr.vmem [resolvable:$true] %s17
      %20 = dma.hbm_to_vmem [thread:$0]  %s0, 64, %s18, [#allocation3]
    $region5: #{tpu_custom_call.1} parent=1 // pred_fallthru
      _
    // Predicated region
    $region6: #{tpu_custom_call.1} parent=1 // pred_check
      _
    $region7: #{tpu_custom_call.1} parent=1 // pred_check_branch
      %22 = sbr.rel (0) target = $region9
    $region8: #{tpu_custom_call.1} parent=1 // pred_region
      %s24 = ssub.s32 10240, 10240
      %25 = vsyncadd [#allocation6], %s24
      %s26 = sshll.u32 [#allocation5], 4
      %s27 = int_to_ptr.vmem [resolvable:$true] %s26
      %32 = dma.hbm_to_vmem [thread:$0]  %s1, 10240, %s27, [#allocation6], 128, 128, 8
    $region9: #{tpu_custom_call.1} parent=1 // pred_fallthru
      _
    // Predicated region
    $region10: #{tpu_custom_call.1} parent=1 // pred_check
      _
    $region11: #{tpu_custom_call.1} parent=1 // pred_check_branch
      %34 = sbr.rel (0) target = $region13
    $region12: #{tpu_custom_call.1} parent=1 // pred_region
      _
    $region13: #{tpu_custom_call.1} parent=1 // pred_fallthru
      _
    // Predicated region
    $region14: #{tpu_custom_call.1} parent=1 // pred_check
      _
    $region15: #{tpu_custom_call.1} parent=1 // pred_check_branch
      %36 = sbr.rel (0) target = $region17
    $region16: #{tpu_custom_call.1} parent=1 // pred_region
      %37 = dma.done [#allocation3], 64
    $region17: #{tpu_custom_call.1} parent=1 // pred_fallthru
      _
    // Predicated region
    $region18: #{tpu_custom_call.1} parent=1 // pred_check
      _
    $region19: #{tpu_custom_call.1} parent=1 // pred_check_branch
      %39 = sbr.rel (0) target = $region21
    $region20: #{tpu_custom_call.1} parent=1 // pred_region
      %40 = dma.done [#allocation6], 10240
    $region21: #{tpu_custom_call.1} parent=1 // pred_fallthru
      _
    %v41 = vld [vmem:[#allocation2] sm:$0xf]
    %v42 = vld [vmem:[#allocation5] sm:$0xff]
    %v43 = vld [vmem:[#allocation5 + $0x8] sm:$0xff]
    %v44 = vld [vmem:[#allocation5 + $0x10] sm:$0xff]
    %v45 = vld [vmem:[#allocation5 + $0x18] sm:$0xff]
    %v46 = vld [vmem:[#allocation5 + $0x20] sm:$0xff]
    %v47 = vld [vmem:[#allocation5 + $0x28] sm:$0xff]
    %v48 = vld [vmem:[#allocation5 + $0x30] sm:$0xff]
    %v49 = vld [vmem:[#allocation5 + $0x38] sm:$0xff]
    %v50 = vld [vmem:[#allocation5 + $0x40] sm:$0xff]
    %v51 = vld [vmem:[#allocation5 + $0x48] sm:$0xff]
    %v52 = vld [vmem:[#allocation5 + $0x50] sm:$0xff]
    %v53 = vld [vmem:[#allocation5 + $0x58] sm:$0xff]
    %v54 = vld [vmem:[#allocation5 + $0x60] sm:$0xff]
    %v55 = vld [vmem:[#allocation5 + $0x68] sm:$0xff]
    %v56 = vld [vmem:[#allocation5 + $0x70] sm:$0xff]
    %v57 = vld [vmem:[#allocation5 + $0x78] sm:$0xff]
    %v58 = vld [vmem:[%s2] sm:$0x1]
    %v60 = vlaneseq
    %v61 = vshrl.u32 %v60, 7
    %v62 = vsub.s32 0, %v61
    %v63 = vrot.slane %v58, %v62
    %65 = vmatprep.subr.mxu0 0.0
    %66 = vmatpush1.msra.mxu0 %v42
    %67 = vmatprep.subr.mxu0 0.0
    %68 = vmatpush1.msra.mxu0 %v43
    %69 = vmatprep.subr.mxu0 0.0
    %70 = vmatpush1.msra.mxu0 %v44
    %71 = vmatprep.subr.mxu0 0.0
    %72 = vmatpush1.msra.mxu0 %v45
    %73 = vmatprep.subr.mxu0 0.0
    %74 = vmatpush1.msra.mxu0 %v46
    %75 = vmatprep.subr.mxu0 0.0
    %76 = vmatpush1.msra.mxu0 %v47
    %77 = vmatprep.subr.mxu0 0.0
    %78 = vmatpush1.msra.mxu0 %v48
    %79 = vmatprep.subr.mxu0 0.0
    %80 = vmatpush1.msra.mxu0 %v49
    %81 = vmatprep.subr.mxu0 0.0
    %82 = vmatpush1.msra.mxu0 %v50
    %83 = vmatprep.subr.mxu0 0.0
    %84 = vmatpush1.msra.mxu0 %v51
    %85 = vmatprep.subr.mxu0 0.0
    %86 = vmatpush1.msra.mxu0 %v52
    %87 = vmatprep.subr.mxu0 0.0
    %88 = vmatpush1.msra.mxu0 %v53
    %89 = vmatprep.subr.mxu0 0.0
    %90 = vmatpush1.msra.mxu0 %v54
    %91 = vmatprep.subr.mxu0 0.0
    %92 = vmatpush1.msra.mxu0 %v55
    %93 = vmatprep.subr.mxu0 0.0
    %94 = vmatpush1.msra.mxu0 %v56
    %95 = vmatprep.subr.mxu0 0.0
    %96 = vmatpush1.msra.mxu0 %v57
    %97 = vmatprep.subr.mxu0 0.0
    %98 = vmatpush1.msra.mxu0 0.0
    %99 = vmatprep.subr.mxu0 0.0
    %100 = vmatpush1.msra.mxu0 0.0
    %101 = vmatprep.subr.mxu0 0.0
    %102 = vmatpush1.msra.mxu0 0.0
    %103 = vmatprep.subr.mxu0 0.0
    %104 = vmatpush1.msra.mxu0 0.0
    %105 = vmatprep.subr.mxu0 0.0
    %106 = vmatpush1.msra.mxu0 0.0
    %107 = vmatprep.subr.mxu0 0.0
    %108 = vmatpush1.msra.mxu0 0.0
    %109 = vmatprep.subr.mxu0 0.0
    %110 = vmatpush1.msra.mxu0 0.0
    %111 = vmatprep.subr.mxu0 0.0
    %112 = vmatpush1.msra.mxu0 0.0
    %113 = vmatprep.subr.mxu0 0.0
    %114 = vmatpush1.msra.mxu0 0.0
    %115 = vmatprep.subr.mxu0 0.0
    %116 = vmatpush1.msra.mxu0 0.0
    %117 = vmatprep.subr.mxu0 0.0
    %118 = vmatpush1.msra.mxu0 0.0
    %119 = vmatprep.subr.mxu0 0.0
    %120 = vmatpush1.msra.mxu0 0.0
    %121 = vmatprep.subr.mxu0 0.0
    %122 = vmatpush1.msra.mxu0 0.0
    %123 = vmatprep.subr.mxu0 0.0
    %124 = vmatpush1.msra.mxu0 0.0
    %125 = vmatprep.subr.mxu0 0.0
    %126 = vmatpush1.msra.mxu0 0.0
    %127 = vmatprep.subr.mxu0 0.0
    %128 = vmatpush1.msra.mxu0 0.0
    %129 = vmatprep.mubr.f32.mxu0 0.0
    %130 = vmatmul.mubr.f32.gmra.mrb[0].mxu0 %v41
    %v131 = vpop.f32.mrb[0].mxu0
    %v132 = vadd.f32 %v63, %v131
    %v133 = vpop.f32.mrb[0].mxu0
    %134 = vdwg.mxu0
    %v135 = vand.u32 2147483647, %v132
    %vm136 = vcmp.le.f32.partialorder %v135, 0.7853982
    %vm137 = vcmp.lt.s32.totalorder %v132, 0
    %v138 = vand.u32 %v132, 2139095040
    %v139 = vshrl.u32 %v138, 23
    %v140 = vsub.s32 %v139, 127
    %v141 = vand.u32 2147483647, %v132
    %v142 = vand.u32 %v141, 8388607
    %v143 = vor.u32 %v142, 8388608
    %v144 = vsub.s32 0, %v143
    %v145 = vadd.s32 %v140, 1
    %vm146 = vcmp.gt.s32.totalorder %v145, 0
    %v147 = vsel %vm146, %v145, 0
    %v148 = vshrl.u32 %v147, 5
    %v149 = vand.u32 %v147, 31
    %v150 = vsub.s32 32, %v149
    %v151 = vshrl.u32 683565275, %v150
    %v152 = vshll.u32 683565275, %v149
    %v153 = vshrl.u32 2475754826, %v150
    %v154 = vor.u32 %v152, %v153
    %v155 = vshll.u32 2475754826, %v149
    %v156 = vshrl.u32 2131351028, %v150
    %v157 = vor.u32 %v155, %v156
    %v158 = vshll.u32 2131351028, %v149
    %v159 = vshrl.u32 2102212464, %v150
    %v160 = vor.u32 %v158, %v159
    %v161 = vshll.u32 2102212464, %v149
    %v162 = vshrl.u32 920167782, %v150
    %v163 = vor.u32 %v161, %v162
    %v164 = vshll.u32 920167782, %v149
    %v165 = vshrl.u32 1326507024, %v150
    %v166 = vor.u32 %v164, %v165
    %vm167 = vcmp.lt.s32.totalorder %v148, 1
    %vm168 = vcmp.lt.s32.totalorder %v148, 2
    %vm169 = vcmp.lt.s32.totalorder %v148, 3
    %vm170 = vcmp.lt.s32.totalorder %v148, 4
    %v171 = vsel %vm167, %v151, %v154
    %v172 = vsel %vm170, %v160, 2102212464
    %v173 = vsel %vm169, %v157, %v172
    %v174 = vsel %vm168, %v171, %v173
    %v175 = vsel %vm167, %v154, %v157
    %v176 = vsel %vm170, %v163, 920167782
    %v177 = vsel %vm169, %v160, %v176
    %v178 = vsel %vm168, %v175, %v177
    %v179 = vsel %vm167, %v157, %v160
    %v180 = vsel %vm170, %v166, 1326507024
    %v181 = vsel %vm169, %v163, %v180
    %v182 = vsel %vm168, %v179, %v181
    %v183 = vshll.u32 %v143, 8
    %v184 = vmul.u32.u64.compose %v183, %v182
    %v185 = vextract.low.u32 %v184
    %v186 = vextract.high.u32 %v184
    %v187 = vmul.u32.u64.compose %v183, %v178
    %v188 = vextract.low.u32 %v187
    %v189 = vextract.high.u32 %v187
    %v190 = vmul.u32 %v183, %v174
    %v191 = vadd.s32 %v186, %v188
    %vm192 = vc.u32 %v186, %v188
    %v193 = vadd.s32 %v189, 1
    %v194 = vsel %vm192, %v193, %v189
    %v195 = vadd.s32 %v190, %v194
    %v196 = vadd.s32 %v195, 536870912
    %v197 = vshrl.u32 %v196, 30
    %v198 = vshll.u32 %v197, 30
    %v199 = vsub.s32 %v195, %v198
    %vm200 = vcmp.lt.s32.totalorder %v199, 0
    %v201 = vsub.s32 0, %v199
    %v202 = vsel %vm200, %v201, %v199
    %v203 = vclz %v202
    %v204 = vsub.s32 %v203, 2
    %vm205 = vcmp.gt.s32.totalorder 0, %v204
    %v206 = vsel %vm205, 0, %v204
    %v207 = vsub.s32 32, %v206
    %v208 = vshll.u32 %v199, %v206
    %v209 = vshrl.u32 %v191, %v207
    %v210 = vor.u32 %v208, %v209
    %v211 = vsub.s32 4294967266, %v206
    %v212 = vadd.s32 %v211, 127
    %v213 = vshll.u32 %v212, 23
    %v214 = vor.u32 4788187, %v213
    %v215 = vand.u32 2147483647, %v214
    %v217 = vcvt.s32.f32 %v210
    %v218 = vmul.f32 %v217, %v215
    %v219 = vxor.u32 %v218, 2147483648
    %v220 = vsel %vm137, %v219, %v218
    %v221 = vsub.s32 4, %v197
    %v222 = vsel %vm137, %v221, %v197
    %v223 = vsel %vm136, %v132, %v220
    %v224 = vsel %vm136, 0, %v222
    %v225 = vcosq.f32.pop %v223
    %v226 = vsinq.f32.pop %v223
    %vm227 = vweird.f32 %v132
    %v228 = vadd.s32 %v224, 3
    %v229 = vand.u32 %v228, 3
    %vm230 = vcmp.lt.s32.totalorder %v229, 2
    %vm231 = vcmp.eq.s32.totalorder %v229, 0
    %v232 = vxor.u32 %v226, 2147483648
    %v233 = vsel %vm231, %v225, %v232
    %vm234 = vcmp.eq.s32.totalorder %v229, 2
    %v235 = vxor.u32 %v225, 2147483648
    %v236 = vsel %vm234, %v235, %v226
    %v237 = vsel %vm230, %v233, %v236
    %v238 = vsel %vm227, nan, %v237
    %s239 = scalar_lea.vmem [#allocation5], 128
    %v240 = vld [vmem:[%s239] sm:$0xff]
    %v241 = vld [vmem:[%s239 + $0x8] sm:$0xff]
    %v242 = vld [vmem:[%s239 + $0x10] sm:$0xff]
    %v243 = vld [vmem:[%s239 + $0x18] sm:$0xff]
    %v244 = vld [vmem:[%s239 + $0x20] sm:$0xff]
    %v245 = vld [vmem:[%s239 + $0x28] sm:$0xff]
    %v246 = vld [vmem:[%s239 + $0x30] sm:$0xff]
    %v247 = vld [vmem:[%s239 + $0x38] sm:$0xff]
    %v248 = vld [vmem:[%s239 + $0x40] sm:$0xff]
    %v249 = vld [vmem:[%s239 + $0x48] sm:$0xff]
    %v250 = vld [vmem:[%s239 + $0x50] sm:$0xff]
    %v251 = vld [vmem:[%s239 + $0x58] sm:$0xff]
    %v252 = vld [vmem:[%s239 + $0x60] sm:$0xff]
    %v253 = vld [vmem:[%s239 + $0x68] sm:$0xff]
    %v254 = vld [vmem:[%s239 + $0x70] sm:$0xff]
    %v255 = vld [vmem:[%s239 + $0x78] sm:$0xff]
    %s256 = scalar_lea.vmem %s2, 1
    %v257 = vld [vmem:[%s256] sm:$0x1]
    %v259 = vlaneseq
    %v260 = vshrl.u32 %v259, 7
    %v261 = vsub.s32 0, %v260
    %v262 = vrot.slane %v257, %v261
    %264 = vmatprep.subr.mxu0 0.0
    %265 = vmatpush1.msra.mxu0 %v240
    %266 = vmatprep.subr.mxu0 0.0
    %267 = vmatpush1.msra.mxu0 %v241
    %268 = vmatprep.subr.mxu0 0.0
    %269 = vmatpush1.msra.mxu0 %v242
    %270 = vmatprep.subr.mxu0 0.0
    %271 = vmatpush1.msra.mxu0 %v243
    %272 = vmatprep.subr.mxu0 0.0
    %273 = vmatpush1.msra.mxu0 %v244
    %274 = vmatprep.subr.mxu0 0.0
    %275 = vmatpush1.msra.mxu0 %v245
    %276 = vmatprep.subr.mxu0 0.0
    %277 = vmatpush1.msra.mxu0 %v246
    %278 = vmatprep.subr.mxu0 0.0
    %279 = vmatpush1.msra.mxu0 %v247
    %280 = vmatprep.subr.mxu0 0.0
    %281 = vmatpush1.msra.mxu0 %v248
    %282 = vmatprep.subr.mxu0 0.0
    %283 = vmatpush1.msra.mxu0 %v249
    %284 = vmatprep.subr.mxu0 0.0
    %285 = vmatpush1.msra.mxu0 %v250
    %286 = vmatprep.subr.mxu0 0.0
    %287 = vmatpush1.msra.mxu0 %v251
    %288 = vmatprep.subr.mxu0 0.0
    %289 = vmatpush1.msra.mxu0 %v252
    %290 = vmatprep.subr.mxu0 0.0
    %291 = vmatpush1.msra.mxu0 %v253
    %292 = vmatprep.subr.mxu0 0.0
    %293 = vmatpush1.msra.mxu0 %v254
    %294 = vmatprep.subr.mxu0 0.0
    %295 = vmatpush1.msra.mxu0 %v255
    %296 = vmatprep.subr.mxu0 0.0
    %297 = vmatpush1.msra.mxu0 0.0
    %298 = vmatprep.subr.mxu0 0.0
    %299 = vmatpush1.msra.mxu0 0.0
    %300 = vmatprep.subr.mxu0 0.0
    %301 = vmatpush1.msra.mxu0 0.0
    %302 = vmatprep.subr.mxu0 0.0
    %303 = vmatpush1.msra.mxu0 0.0
    %304 = vmatprep.subr.mxu0 0.0
    %305 = vmatpush1.msra.mxu0 0.0
    %306 = vmatprep.subr.mxu0 0.0
    %307 = vmatpush1.msra.mxu0 0.0
    %308 = vmatprep.subr.mxu0 0.0
    %309 = vmatpush1.msra.mxu0 0.0
    %310 = vmatprep.subr.mxu0 0.0
    %311 = vmatpush1.msra.mxu0 0.0
    %312 = vmatprep.subr.mxu0 0.0
    %313 = vmatpush1.msra.mxu0 0.0
    %314 = vmatprep.subr.mxu0 0.0
    %315 = vmatpush1.msra.mxu0 0.0
    %316 = vmatprep.subr.mxu0 0.0
    %317 = vmatpush1.msra.mxu0 0.0
    %318 = vmatprep.subr.mxu0 0.0
    %319 = vmatpush1.msra.mxu0 0.0
    %320 = vmatprep.subr.mxu0 0.0
    %321 = vmatpush1.msra.mxu0 0.0
    %322 = vmatprep.subr.mxu0 0.0
    %323 = vmatpush1.msra.mxu0 0.0
    %324 = vmatprep.subr.mxu0 0.0
    %325 = vmatpush1.msra.mxu0 0.0
    %326 = vmatprep.subr.mxu0 0.0
    %327 = vmatpush1.msra.mxu0 0.0
    %328 = vmatprep.mubr.f32.mxu0 0.0
    %329 = vmatmul.mubr.f32.gmra.mrb[0].mxu0 %v238
    %v330 = vpop.f32.mrb[0].mxu0
    %v331 = vadd.f32 %v262, %v330
    %v332 = vpop.f32.mrb[0].mxu0
    %333 = vdwg.mxu0
    %v334 = vand.u32 2147483647, %v331
    %vm335 = vcmp.le.f32.partialorder %v334, 0.7853982
    %vm336 = vcmp.lt.s32.totalorder %v331, 0
    %v337 = vand.u32 %v331, 2139095040
    %v338 = vshrl.u32 %v337, 23
    %v339 = vsub.s32 %v338, 127
    %v340 = vand.u32 2147483647, %v331
    %v341 = vand.u32 %v340, 8388607
    %v342 = vor.u32 %v341, 8388608
    %v343 = vsub.s32 0, %v342
    %v344 = vadd.s32 %v339, 1
    %vm345 = vcmp.gt.s32.totalorder %v344, 0
    %v346 = vsel %vm345, %v344, 0
    %v347 = vshrl.u32 %v346, 5
    %v348 = vand.u32 %v346, 31
    %v349 = vsub.s32 32, %v348
    %v350 = vshrl.u32 683565275, %v349
    %v351 = vshll.u32 683565275, %v348
    %v352 = vshrl.u32 2475754826, %v349
    %v353 = vor.u32 %v351, %v352
    %v354 = vshll.u32 2475754826, %v348
    %v355 = vshrl.u32 2131351028, %v349
    %v356 = vor.u32 %v354, %v355
    %v357 = vshll.u32 2131351028, %v348
    %v358 = vshrl.u32 2102212464, %v349
    %v359 = vor.u32 %v357, %v358
    %v360 = vshll.u32 2102212464, %v348
    %v361 = vshrl.u32 920167782, %v349
    %v362 = vor.u32 %v360, %v361
    %v363 = vshll.u32 920167782, %v348
    %v364 = vshrl.u32 1326507024, %v349
    %v365 = vor.u32 %v363, %v364
    %vm366 = vcmp.lt.s32.totalorder %v347, 1
    %vm367 = vcmp.lt.s32.totalorder %v347, 2
    %vm368 = vcmp.lt.s32.totalorder %v347, 3
    %vm369 = vcmp.lt.s32.totalorder %v347, 4
    %v370 = vsel %vm366, %v350, %v353
    %v371 = vsel %vm369, %v359, 2102212464
    %v372 = vsel %vm368, %v356, %v371
    %v373 = vsel %vm367, %v370, %v372
    %v374 = vsel %vm366, %v353, %v356
    %v375 = vsel %vm369, %v362, 920167782
    %v376 = vsel %vm368, %v359, %v375
    %v377 = vsel %vm367, %v374, %v376
    %v378 = vsel %vm366, %v356, %v359
    %v379 = vsel %vm369, %v365, 1326507024
    %v380 = vsel %vm368, %v362, %v379
    %v381 = vsel %vm367, %v378, %v380
    %v382 = vshll.u32 %v342, 8
    %v383 = vmul.u32.u64.compose %v382, %v381
    %v384 = vextract.low.u32 %v383
    %v385 = vextract.high.u32 %v383
    %v386 = vmul.u32.u64.compose %v382, %v377
    %v387 = vextract.low.u32 %v386
    %v388 = vextract.high.u32 %v386
    %v389 = vmul.u32 %v382, %v373
    %v390 = vadd.s32 %v385, %v387
    %vm391 = vc.u32 %v385, %v387
    %v392 = vadd.s32 %v388, 1
    %v393 = vsel %vm391, %v392, %v388
    %v394 = vadd.s32 %v389, %v393
    %v395 = vadd.s32 %v394, 536870912
    %v396 = vshrl.u32 %v395, 30
    %v397 = vshll.u32 %v396, 30
    %v398 = vsub.s32 %v394, %v397
    %vm399 = vcmp.lt.s32.totalorder %v398, 0
    %v400 = vsub.s32 0, %v398
    %v401 = vsel %vm399, %v400, %v398
    %v402 = vclz %v401
    %v403 = vsub.s32 %v402, 2
    %vm404 = vcmp.gt.s32.totalorder 0, %v403
    %v405 = vsel %vm404, 0, %v403
    %v406 = vsub.s32 32, %v405
    %v407 = vshll.u32 %v398, %v405
    %v408 = vshrl.u32 %v390, %v406
    %v409 = vor.u32 %v407, %v408
    %v410 = vsub.s32 4294967266, %v405
    %v411 = vadd.s32 %v410, 127
    %v412 = vshll.u32 %v411, 23
    %v413 = vor.u32 4788187, %v412
    %v414 = vand.u32 2147483647, %v413
    %v416 = vcvt.s32.f32 %v409
    %v417 = vmul.f32 %v416, %v414
    %v418 = vxor.u32 %v417, 2147483648
    %v419 = vsel %vm336, %v418, %v417
    %v420 = vsub.s32 4, %v396
    %v421 = vsel %vm336, %v420, %v396
    %v422 = vsel %vm335, %v331, %v419
    %v423 = vsel %vm335, 0, %v421
    %v424 = vcosq.f32.pop %v422
    %v425 = vsinq.f32.pop %v422
    %vm426 = vweird.f32 %v331
    %v427 = vadd.s32 %v423, 3
    %v428 = vand.u32 %v427, 3
    %vm429 = vcmp.lt.s32.totalorder %v428, 2
    %vm430 = vcmp.eq.s32.totalorder %v428, 0
    %v431 = vxor.u32 %v425, 2147483648
    %v432 = vsel %vm430, %v424, %v431
    %vm433 = vcmp.eq.s32.totalorder %v428, 2
    %v434 = vxor.u32 %v424, 2147483648
    %v435 = vsel %vm433, %v434, %v425
    %v436 = vsel %vm429, %v432, %v435
    %v437 = vsel %vm426, nan, %v436
    %v438 = vadd.f32 %v437, %v41
    %s439 = scalar_lea.vmem [#allocation5], 256
    %v440 = vld [vmem:[%s439] sm:$0xff]
    %v441 = vld [vmem:[%s439 + $0x8] sm:$0xff]
    %v442 = vld [vmem:[%s439 + $0x10] sm:$0xff]
    %v443 = vld [vmem:[%s439 + $0x18] sm:$0xff]
    %v444 = vld [vmem:[%s439 + $0x20] sm:$0xff]
    %v445 = vld [vmem:[%s439 + $0x28] sm:$0xff]
    %v446 = vld [vmem:[%s439 + $0x30] sm:$0xff]
    %v447 = vld [vmem:[%s439 + $0x38] sm:$0xff]
    %v448 = vld [vmem:[%s439 + $0x40] sm:$0xff]
    %v449 = vld [vmem:[%s439 + $0x48] sm:$0xff]
    %v450 = vld [vmem:[%s439 + $0x50] sm:$0xff]
    %v451 = vld [vmem:[%s439 + $0x58] sm:$0xff]
    %v452 = vld [vmem:[%s439 + $0x60] sm:$0xff]
    %v453 = vld [vmem:[%s439 + $0x68] sm:$0xff]
    %v454 = vld [vmem:[%s439 + $0x70] sm:$0xff]
    %v455 = vld [vmem:[%s439 + $0x78] sm:$0xff]
    %s456 = scalar_lea.vmem %s2, 2
    %v457 = vld [vmem:[%s456] sm:$0x1]
    %v459 = vlaneseq
    %v460 = vshrl.u32 %v459, 7
    %v461 = vsub.s32 0, %v460
    %v462 = vrot.slane %v457, %v461
    %464 = vmatprep.subr.mxu0 0.0
    %465 = vmatpush1.msra.mxu0 %v440
    %466 = vmatprep.subr.mxu0 0.0
    %467 = vmatpush1.msra.mxu0 %v441
    %468 = vmatprep.subr.mxu0 0.0
    %469 = vmatpush1.msra.mxu0 %v442
    %470 = vmatprep.subr.mxu0 0.0
    %471 = vmatpush1.msra.mxu0 %v443
    %472 = vmatprep.subr.mxu0 0.0
    %473 = vmatpush1.msra.mxu0 %v444
    %474 = vmatprep.subr.mxu0 0.0
    %475 = vmatpush1.msra.mxu0 %v445
    %476 = vmatprep.subr.mxu0 0.0
    %477 = vmatpush1.msra.mxu0 %v446
    %478 = vmatprep.subr.mxu0 0.0
    %479 = vmatpush1.msra.mxu0 %v447
    %480 = vmatprep.subr.mxu0 0.0
    %481 = vmatpush1.msra.mxu0 %v448
    %482 = vmatprep.subr.mxu0 0.0
    %483 = vmatpush1.msra.mxu0 %v449
    %484 = vmatprep.subr.mxu0 0.0
    %485 = vmatpush1.msra.mxu0 %v450
    %486 = vmatprep.subr.mxu0 0.0
    %487 = vmatpush1.msra.mxu0 %v451
    %488 = vmatprep.subr.mxu0 0.0
    %489 = vmatpush1.msra.mxu0 %v452
    %490 = vmatprep.subr.mxu0 0.0
    %491 = vmatpush1.msra.mxu0 %v453
    %492 = vmatprep.subr.mxu0 0.0
    %493 = vmatpush1.msra.mxu0 %v454
    %494 = vmatprep.subr.mxu0 0.0
    %495 = vmatpush1.msra.mxu0 %v455
    %496 = vmatprep.subr.mxu0 0.0
    %497 = vmatpush1.msra.mxu0 0.0
    %498 = vmatprep.subr.mxu0 0.0
    %499 = vmatpush1.msra.mxu0 0.0
    %500 = vmatprep.subr.mxu0 0.0
    %501 = vmatpush1.msra.mxu0 0.0
    %502 = vmatprep.subr.mxu0 0.0
    %503 = vmatpush1.msra.mxu0 0.0
    %504 = vmatprep.subr.mxu0 0.0
    %505 = vmatpush1.msra.mxu0 0.0
    %506 = vmatprep.subr.mxu0 0.0
    %507 = vmatpush1.msra.mxu0 0.0
    %508 = vmatprep.subr.mxu0 0.0
    %509 = vmatpush1.msra.mxu0 0.0
    %510 = vmatprep.subr.mxu0 0.0
    %511 = vmatpush1.msra.mxu0 0.0
    %512 = vmatprep.subr.mxu0 0.0
    %513 = vmatpush1.msra.mxu0 0.0
    %514 = vmatprep.subr.mxu0 0.0
    %515 = vmatpush1.msra.mxu0 0.0
    %516 = vmatprep.subr.mxu0 0.0
    %517 = vmatpush1.msra.mxu0 0.0
    %518 = vmatprep.subr.mxu0 0.0
    %519 = vmatpush1.msra.mxu0 0.0
    %520 = vmatprep.subr.mxu0 0.0
    %521 = vmatpush1.msra.mxu0 0.0
    %522 = vmatprep.subr.mxu0 0.0
    %523 = vmatpush1.msra.mxu0 0.0
    %524 = vmatprep.subr.mxu0 0.0
    %525 = vmatpush1.msra.mxu0 0.0
    %526 = vmatprep.subr.mxu0 0.0
    %527 = vmatpush1.msra.mxu0 0.0
    %528 = vmatprep.mubr.f32.mxu0 0.0
    %529 = vmatmul.mubr.f32.gmra.mrb[0].mxu0 %v438
    %v530 = vpop.f32.mrb[0].mxu0
    %v531 = vadd.f32 %v462, %v530
    %v532 = vpop.f32.mrb[0].mxu0
    %533 = vdwg.mxu0
    %v534 = vand.u32 2147483647, %v531
    %vm535 = vcmp.le.f32.partialorder %v534, 0.7853982
    %vm536 = vcmp.lt.s32.totalorder %v531, 0
    %v537 = vand.u32 %v531, 2139095040
    %v538 = vshrl.u32 %v537, 23
    %v539 = vsub.s32 %v538, 127
    %v540 = vand.u32 2147483647, %v531
    %v541 = vand.u32 %v540, 8388607
    %v542 = vor.u32 %v541, 8388608
    %v543 = vsub.s32 0, %v542
    %v544 = vadd.s32 %v539, 1
    %vm545 = vcmp.gt.s32.totalorder %v544, 0
    %v546 = vsel %vm545, %v544, 0
    %v547 = vshrl.u32 %v546, 5
    %v548 = vand.u32 %v546, 31
    %v549 = vsub.s32 32, %v548
    %v550 = vshrl.u32 683565275, %v549
    %v551 = vshll.u32 683565275, %v548
    %v552 = vshrl.u32 2475754826, %v549
    %v553 = vor.u32 %v551, %v552
    %v554 = vshll.u32 2475754826, %v548
    %v555 = vshrl.u32 2131351028, %v549
    %v556 = vor.u32 %v554, %v555
    %v557 = vshll.u32 2131351028, %v548
    %v558 = vshrl.u32 2102212464, %v549
    %v559 = vor.u32 %v557, %v558
    %v560 = vshll.u32 2102212464, %v548
    %v561 = vshrl.u32 920167782, %v549
    %v562 = vor.u32 %v560, %v561
    %v563 = vshll.u32 920167782, %v548
    %v564 = vshrl.u32 1326507024, %v549
    %v565 = vor.u32 %v563, %v564
    %vm566 = vcmp.lt.s32.totalorder %v547, 1
    %vm567 = vcmp.lt.s32.totalorder %v547, 2
    %vm568 = vcmp.lt.s32.totalorder %v547, 3
    %vm569 = vcmp.lt.s32.totalorder %v547, 4
    %v570 = vsel %vm566, %v550, %v553
    %v571 = vsel %vm569, %v559, 2102212464
    %v572 = vsel %vm568, %v556, %v571
    %v573 = vsel %vm567, %v570, %v572
    %v574 = vsel %vm566, %v553, %v556
    %v575 = vsel %vm569, %v562, 920167782
    %v576 = vsel %vm568, %v559, %v575
    %v577 = vsel %vm567, %v574, %v576
    %v578 = vsel %vm566, %v556, %v559
    %v579 = vsel %vm569, %v565, 1326507024
    %v580 = vsel %vm568, %v562, %v579
    %v581 = vsel %vm567, %v578, %v580
    %v582 = vshll.u32 %v542, 8
    %v583 = vmul.u32.u64.compose %v582, %v581
    %v584 = vextract.low.u32 %v583
    %v585 = vextract.high.u32 %v583
    %v586 = vmul.u32.u64.compose %v582, %v577
    %v587 = vextract.low.u32 %v586
    %v588 = vextract.high.u32 %v586
    %v589 = vmul.u32 %v582, %v573
    %v590 = vadd.s32 %v585, %v587
    %vm591 = vc.u32 %v585, %v587
    %v592 = vadd.s32 %v588, 1
    %v593 = vsel %vm591, %v592, %v588
    %v594 = vadd.s32 %v589, %v593
    %v595 = vadd.s32 %v594, 536870912
    %v596 = vshrl.u32 %v595, 30
    %v597 = vshll.u32 %v596, 30
    %v598 = vsub.s32 %v594, %v597
    %vm599 = vcmp.lt.s32.totalorder %v598, 0
    %v600 = vsub.s32 0, %v598
    %v601 = vsel %vm599, %v600, %v598
    %v602 = vclz %v601
    %v603 = vsub.s32 %v602, 2
    %vm604 = vcmp.gt.s32.totalorder 0, %v603
    %v605 = vsel %vm604, 0, %v603
    %v606 = vsub.s32 32, %v605
    %v607 = vshll.u32 %v598, %v605
    %v608 = vshrl.u32 %v590, %v606
    %v609 = vor.u32 %v607, %v608
    %v610 = vsub.s32 4294967266, %v605
    %v611 = vadd.s32 %v610, 127
    %v612 = vshll.u32 %v611, 23
    %v613 = vor.u32 4788187, %v612
    %v614 = vand.u32 2147483647, %v613
    %v616 = vcvt.s32.f32 %v609
    %v617 = vmul.f32 %v616, %v614
    %v618 = vxor.u32 %v617, 2147483648
    %v619 = vsel %vm536, %v618, %v617
    %v620 = vsub.s32 4, %v596
    %v621 = vsel %vm536, %v620, %v596
    %v622 = vsel %vm535, %v531, %v619
    %v623 = vsel %vm535, 0, %v621
    %v624 = vcosq.f32.pop %v622
    %v625 = vsinq.f32.pop %v622
    %vm626 = vweird.f32 %v531
    %v627 = vadd.s32 %v623, 3
    %v628 = vand.u32 %v627, 3
    %vm629 = vcmp.lt.s32.totalorder %v628, 2
    %vm630 = vcmp.eq.s32.totalorder %v628, 0
    %v631 = vxor.u32 %v625, 2147483648
    %v632 = vsel %vm630, %v624, %v631
    %vm633 = vcmp.eq.s32.totalorder %v628, 2
    %v634 = vxor.u32 %v624, 2147483648
    %v635 = vsel %vm633, %v634, %v625
    %v636 = vsel %vm629, %v632, %v635
    %v637 = vsel %vm626, nan, %v636
    %s638 = scalar_lea.vmem [#allocation5], 384
    %v639 = vld [vmem:[%s638] sm:$0xff]
    %v640 = vld [vmem:[%s638 + $0x8] sm:$0xff]
    %v641 = vld [vmem:[%s638 + $0x10] sm:$0xff]
    %v642 = vld [vmem:[%s638 + $0x18] sm:$0xff]
    %v643 = vld [vmem:[%s638 + $0x20] sm:$0xff]
    %v644 = vld [vmem:[%s638 + $0x28] sm:$0xff]
    %v645 = vld [vmem:[%s638 + $0x30] sm:$0xff]
    %v646 = vld [vmem:[%s638 + $0x38] sm:$0xff]
    %v647 = vld [vmem:[%s638 + $0x40] sm:$0xff]
    %v648 = vld [vmem:[%s638 + $0x48] sm:$0xff]
    %v649 = vld [vmem:[%s638 + $0x50] sm:$0xff]
    %v650 = vld [vmem:[%s638 + $0x58] sm:$0xff]
    %v651 = vld [vmem:[%s638 + $0x60] sm:$0xff]
    %v652 = vld [vmem:[%s638 + $0x68] sm:$0xff]
    %v653 = vld [vmem:[%s638 + $0x70] sm:$0xff]
    %v654 = vld [vmem:[%s638 + $0x78] sm:$0xff]
    %s655 = scalar_lea.vmem %s2, 3
    %v656 = vld [vmem:[%s655] sm:$0x1]
    %v658 = vlaneseq
    %v659 = vshrl.u32 %v658, 7
    %v660 = vsub.s32 0, %v659
    %v661 = vrot.slane %v656, %v660
    %663 = vmatprep.subr.mxu0 0.0
    %664 = vmatpush1.msra.mxu0 %v639
    %665 = vmatprep.subr.mxu0 0.0
    %666 = vmatpush1.msra.mxu0 %v640
    %667 = vmatprep.subr.mxu0 0.0
    %668 = vmatpush1.msra.mxu0 %v641
    %669 = vmatprep.subr.mxu0 0.0
    %670 = vmatpush1.msra.mxu0 %v642
    %671 = vmatprep.subr.mxu0 0.0
    %672 = vmatpush1.msra.mxu0 %v643
    %673 = vmatprep.subr.mxu0 0.0
    %674 = vmatpush1.msra.mxu0 %v644
    %675 = vmatprep.subr.mxu0 0.0
    %676 = vmatpush1.msra.mxu0 %v645
    %677 = vmatprep.subr.mxu0 0.0
    %678 = vmatpush1.msra.mxu0 %v646
    %679 = vmatprep.subr.mxu0 0.0
    %680 = vmatpush1.msra.mxu0 %v647
    %681 = vmatprep.subr.mxu0 0.0
    %682 = vmatpush1.msra.mxu0 %v648
    %683 = vmatprep.subr.mxu0 0.0
    %684 = vmatpush1.msra.mxu0 %v649
    %685 = vmatprep.subr.mxu0 0.0
    %686 = vmatpush1.msra.mxu0 %v650
    %687 = vmatprep.subr.mxu0 0.0
    %688 = vmatpush1.msra.mxu0 %v651
    %689 = vmatprep.subr.mxu0 0.0
    %690 = vmatpush1.msra.mxu0 %v652
    %691 = vmatprep.subr.mxu0 0.0
    %692 = vmatpush1.msra.mxu0 %v653
    %693 = vmatprep.subr.mxu0 0.0
    %694 = vmatpush1.msra.mxu0 %v654
    %695 = vmatprep.subr.mxu0 0.0
    %696 = vmatpush1.msra.mxu0 0.0
    %697 = vmatprep.subr.mxu0 0.0
    %698 = vmatpush1.msra.mxu0 0.0
    %699 = vmatprep.subr.mxu0 0.0
    %700 = vmatpush1.msra.mxu0 0.0
    %701 = vmatprep.subr.mxu0 0.0
    %702 = vmatpush1.msra.mxu0 0.0
    %703 = vmatprep.subr.mxu0 0.0
    %704 = vmatpush1.msra.mxu0 0.0
    %705 = vmatprep.subr.mxu0 0.0
    %706 = vmatpush1.msra.mxu0 0.0
    %707 = vmatprep.subr.mxu0 0.0
    %708 = vmatpush1.msra.mxu0 0.0
    %709 = vmatprep.subr.mxu0 0.0
    %710 = vmatpush1.msra.mxu0 0.0
    %711 = vmatprep.subr.mxu0 0.0
    %712 = vmatpush1.msra.mxu0 0.0
    %713 = vmatprep.subr.mxu0 0.0
    %714 = vmatpush1.msra.mxu0 0.0
    %715 = vmatprep.subr.mxu0 0.0
    %716 = vmatpush1.msra.mxu0 0.0
    %717 = vmatprep.subr.mxu0 0.0
    %718 = vmatpush1.msra.mxu0 0.0
    %719 = vmatprep.subr.mxu0 0.0
    %720 = vmatpush1.msra.mxu0 0.0
    %721 = vmatprep.subr.mxu0 0.0
    %722 = vmatpush1.msra.mxu0 0.0
    %723 = vmatprep.subr.mxu0 0.0
    %724 = vmatpush1.msra.mxu0 0.0
    %725 = vmatprep.subr.mxu0 0.0
    %726 = vmatpush1.msra.mxu0 0.0
    %727 = vmatprep.mubr.f32.mxu0 0.0
    %728 = vmatmul.mubr.f32.gmra.mrb[0].mxu0 %v637
    %v729 = vpop.f32.mrb[0].mxu0
    %v730 = vadd.f32 %v661, %v729
    %v731 = vpop.f32.mrb[0].mxu0
    %732 = vdwg.mxu0
    %v733 = vand.u32 2147483647, %v730
    %vm734 = vcmp.le.f32.partialorder %v733, 0.7853982
    %vm735 = vcmp.lt.s32.totalorder %v730, 0
    %v736 = vand.u32 %v730, 2139095040
    %v737 = vshrl.u32 %v736, 23
    %v738 = vsub.s32 %v737, 127
    %v739 = vand.u32 2147483647, %v730
    %v740 = vand.u32 %v739, 8388607
    %v741 = vor.u32 %v740, 8388608
    %v742 = vsub.s32 0, %v741
    %v743 = vadd.s32 %v738, 1
    %vm744 = vcmp.gt.s32.totalorder %v743, 0
    %v745 = vsel %vm744, %v743, 0
    %v746 = vshrl.u32 %v745, 5
    %v747 = vand.u32 %v745, 31
    %v748 = vsub.s32 32, %v747
    %v749 = vshrl.u32 683565275, %v748
    %v750 = vshll.u32 683565275, %v747
    %v751 = vshrl.u32 2475754826, %v748
    %v752 = vor.u32 %v750, %v751
    %v753 = vshll.u32 2475754826, %v747
    %v754 = vshrl.u32 2131351028, %v748
    %v755 = vor.u32 %v753, %v754
    %v756 = vshll.u32 2131351028, %v747
    %v757 = vshrl.u32 2102212464, %v748
    %v758 = vor.u32 %v756, %v757
    %v759 = vshll.u32 2102212464, %v747
    %v760 = vshrl.u32 920167782, %v748
    %v761 = vor.u32 %v759, %v760
    %v762 = vshll.u32 920167782, %v747
    %v763 = vshrl.u32 1326507024, %v748
    %v764 = vor.u32 %v762, %v763
    %vm765 = vcmp.lt.s32.totalorder %v746, 1
    %vm766 = vcmp.lt.s32.totalorder %v746, 2
    %vm767 = vcmp.lt.s32.totalorder %v746, 3
    %vm768 = vcmp.lt.s32.totalorder %v746, 4
    %v769 = vsel %vm765, %v749, %v752
    %v770 = vsel %vm768, %v758, 2102212464
    %v771 = vsel %vm767, %v755, %v770
    %v772 = vsel %vm766, %v769, %v771
    %v773 = vsel %vm765, %v752, %v755
    %v774 = vsel %vm768, %v761, 920167782
    %v775 = vsel %vm767, %v758, %v774
    %v776 = vsel %vm766, %v773, %v775
    %v777 = vsel %vm765, %v755, %v758
    %v778 = vsel %vm768, %v764, 1326507024
    %v779 = vsel %vm767, %v761, %v778
    %v780 = vsel %vm766, %v777, %v779
    %v781 = vshll.u32 %v741, 8
    %v782 = vmul.u32.u64.compose %v781, %v780
    %v783 = vextract.low.u32 %v782
    %v784 = vextract.high.u32 %v782
    %v785 = vmul.u32.u64.compose %v781, %v776
    %v786 = vextract.low.u32 %v785
    %v787 = vextract.high.u32 %v785
    %v788 = vmul.u32 %v781, %v772
    %v789 = vadd.s32 %v784, %v786
    %vm790 = vc.u32 %v784, %v786
    %v791 = vadd.s32 %v787, 1
    %v792 = vsel %vm790, %v791, %v787
    %v793 = vadd.s32 %v788, %v792
    %v794 = vadd.s32 %v793, 536870912
    %v795 = vshrl.u32 %v794, 30
    %v796 = vshll.u32 %v795, 30
    %v797 = vsub.s32 %v793, %v796
    %vm798 = vcmp.lt.s32.totalorder %v797, 0
    %v799 = vsub.s32 0, %v797
    %v800 = vsel %vm798, %v799, %v797
    %v801 = vclz %v800
    %v802 = vsub.s32 %v801, 2
    %vm803 = vcmp.gt.s32.totalorder 0, %v802
    %v804 = vsel %vm803, 0, %v802
    %v805 = vsub.s32 32, %v804
    %v806 = vshll.u32 %v797, %v804
    %v807 = vshrl.u32 %v789, %v805
    %v808 = vor.u32 %v806, %v807
    %v809 = vsub.s32 4294967266, %v804
    %v810 = vadd.s32 %v809, 127
    %v811 = vshll.u32 %v810, 23
    %v812 = vor.u32 4788187, %v811
    %v813 = vand.u32 2147483647, %v812
    %v815 = vcvt.s32.f32 %v808
    %v816 = vmul.f32 %v815, %v813
    %v817 = vxor.u32 %v816, 2147483648
    %v818 = vsel %vm735, %v817, %v816
    %v819 = vsub.s32 4, %v795
    %v820 = vsel %vm735, %v819, %v795
    %v821 = vsel %vm734, %v730, %v818
    %v822 = vsel %vm734, 0, %v820
    %v823 = vcosq.f32.pop %v821
    %v824 = vsinq.f32.pop %v821
    %vm825 = vweird.f32 %v730
    %v826 = vadd.s32 %v822, 3
    %v827 = vand.u32 %v826, 3
    %vm828 = vcmp.lt.s32.totalorder %v827, 2
    %vm829 = vcmp.eq.s32.totalorder %v827, 0
    %v830 = vxor.u32 %v824, 2147483648
    %v831 = vsel %vm829, %v823, %v830
    %vm832 = vcmp.eq.s32.totalorder %v827, 2
    %v833 = vxor.u32 %v823, 2147483648
    %v834 = vsel %vm832, %v833, %v824
    %v835 = vsel %vm828, %v831, %v834
    %v836 = vsel %vm825, nan, %v835
    %v837 = vadd.f32 %v836, %v438
    %s838 = scalar_lea.vmem [#allocation5], 512
    %v839 = vld [vmem:[%s838] sm:$0xff]
    %v840 = vld [vmem:[%s838 + $0x8] sm:$0xff]
    %v841 = vld [vmem:[%s838 + $0x10] sm:$0xff]
    %v842 = vld [vmem:[%s838 + $0x18] sm:$0xff]
    %v843 = vld [vmem:[%s838 + $0x20] sm:$0xff]
    %v844 = vld [vmem:[%s838 + $0x28] sm:$0xff]
    %v845 = vld [vmem:[%s838 + $0x30] sm:$0xff]
    %v846 = vld [vmem:[%s838 + $0x38] sm:$0xff]
    %v847 = vld [vmem:[%s838 + $0x40] sm:$0xff]
    %v848 = vld [vmem:[%s838 + $0x48] sm:$0xff]
    %v849 = vld [vmem:[%s838 + $0x50] sm:$0xff]
    %v850 = vld [vmem:[%s838 + $0x58] sm:$0xff]
    %v851 = vld [vmem:[%s838 + $0x60] sm:$0xff]
    %v852 = vld [vmem:[%s838 + $0x68] sm:$0xff]
    %v853 = vld [vmem:[%s838 + $0x70] sm:$0xff]
    %v854 = vld [vmem:[%s838 + $0x78] sm:$0xff]
    %s855 = scalar_lea.vmem %s2, 4
    %v856 = vld [vmem:[%s855] sm:$0x1]
    %v858 = vlaneseq
    %v859 = vshrl.u32 %v858, 7
    %v860 = vsub.s32 0, %v859
    %v861 = vrot.slane %v856, %v860
    %863 = vmatprep.subr.mxu0 0.0
    %864 = vmatpush1.msra.mxu0 %v839
    %865 = vmatprep.subr.mxu0 0.0
    %866 = vmatpush1.msra.mxu0 %v840
    %867 = vmatprep.subr.mxu0 0.0
    %868 = vmatpush1.msra.mxu0 %v841
    %869 = vmatprep.subr.mxu0 0.0
    %870 = vmatpush1.msra.mxu0 %v842
    %871 = vmatprep.subr.mxu0 0.0
    %872 = vmatpush1.msra.mxu0 %v843
    %873 = vmatprep.subr.mxu0 0.0
    %874 = vmatpush1.msra.mxu0 %v844
    %875 = vmatprep.subr.mxu0 0.0
    %876 = vmatpush1.msra.mxu0 %v845
    %877 = vmatprep.subr.mxu0 0.0
    %878 = vmatpush1.msra.mxu0 %v846
    %879 = vmatprep.subr.mxu0 0.0
    %880 = vmatpush1.msra.mxu0 %v847
    %881 = vmatprep.subr.mxu0 0.0
    %882 = vmatpush1.msra.mxu0 %v848
    %883 = vmatprep.subr.mxu0 0.0
    %884 = vmatpush1.msra.mxu0 %v849
    %885 = vmatprep.subr.mxu0 0.0
    %886 = vmatpush1.msra.mxu0 %v850
    %887 = vmatprep.subr.mxu0 0.0
    %888 = vmatpush1.msra.mxu0 %v851
    %889 = vmatprep.subr.mxu0 0.0
    %890 = vmatpush1.msra.mxu0 %v852
    %891 = vmatprep.subr.mxu0 0.0
    %892 = vmatpush1.msra.mxu0 %v853
    %893 = vmatprep.subr.mxu0 0.0
    %894 = vmatpush1.msra.mxu0 %v854
    %895 = vmatprep.subr.mxu0 0.0
    %896 = vmatpush1.msra.mxu0 0.0
    %897 = vmatprep.subr.mxu0 0.0
    %898 = vmatpush1.msra.mxu0 0.0
    %899 = vmatprep.subr.mxu0 0.0
    %900 = vmatpush1.msra.mxu0 0.0
    %901 = vmatprep.subr.mxu0 0.0
    %902 = vmatpush1.msra.mxu0 0.0
    %903 = vmatprep.subr.mxu0 0.0
    %904 = vmatpush1.msra.mxu0 0.0
    %905 = vmatprep.subr.mxu0 0.0
    %906 = vmatpush1.msra.mxu0 0.0
    %907 = vmatprep.subr.mxu0 0.0
    %908 = vmatpush1.msra.mxu0 0.0
    %909 = vmatprep.subr.mxu0 0.0
    %910 = vmatpush1.msra.mxu0 0.0
    %911 = vmatprep.subr.mxu0 0.0
    %912 = vmatpush1.msra.mxu0 0.0
    %913 = vmatprep.subr.mxu0 0.0
    %914 = vmatpush1.msra.mxu0 0.0
    %915 = vmatprep.subr.mxu0 0.0
    %916 = vmatpush1.msra.mxu0 0.0
    %917 = vmatprep.subr.mxu0 0.0
    %918 = vmatpush1.msra.mxu0 0.0
    %919 = vmatprep.subr.mxu0 0.0
    %920 = vmatpush1.msra.mxu0 0.0
    %921 = vmatprep.subr.mxu0 0.0
    %922 = vmatpush1.msra.mxu0 0.0
    %923 = vmatprep.subr.mxu0 0.0
    %924 = vmatpush1.msra.mxu0 0.0
    %925 = vmatprep.subr.mxu0 0.0
    %926 = vmatpush1.msra.mxu0 0.0
    %927 = vmatprep.mubr.f32.mxu0 0.0
    %928 = vmatmul.mubr.f32.gmra.mrb[0].mxu0 %v837
    %v929 = vpop.f32.mrb[0].mxu0
    %v930 = vadd.f32 %v861, %v929
    %v931 = vpop.f32.mrb[0].mxu0
    %932 = vdwg.mxu0
    %933 = vst [vmem:[#allocation7] sm:$0xf] %v930
    // Predicated region
    $region22: #{tpu_custom_call.1} parent=1 // pred_check
      _
    $region23: #{tpu_custom_call.1} parent=1 // pred_check_branch
      %935 = sbr.rel (0) target = $region25
    $region24: #{tpu_custom_call.1} parent=1 // pred_region
      %s937 = ssub.s32 64, 64
      %938 = vsyncadd [#allocation4], %s937
      %s940 = sshll.u32 [#allocation7], 4
      %s941 = int_to_ptr.vmem [resolvable:$true] %s940
      %943 = dma.vmem_to_hbm [thread:$0]  %s941, 64, %s3, [#allocation4]
    $region25: #{tpu_custom_call.1} parent=1 // pred_fallthru
      _
    // Predicated region
    $region26: #{tpu_custom_call.1} parent=1 // pred_check
      _
    $region27: #{tpu_custom_call.1} parent=1 // pred_check_branch
      %945 = sbr.rel (0) target = $region29
    $region28: #{tpu_custom_call.1} parent=1 // pred_region
      %946 = dma.done [#allocation4], 64
    $region29: #{tpu_custom_call.1} parent=1 // pred_fallthru
      _
    %947 = vsyncpa [#allocation3], 1
    %948 = vsyncpa [#allocation6], 1
    %949 = vsyncpa [#allocation4], 1

</llo_original>
